<compile_context>
chip_gen: v5e
topology: v5e:2x2
jax: 0.10.0
libtpu: 0.0.40
codegen_flags: <defaults>
</compile_context>

<pallas_src>
import jax
import jax.numpy as jnp
from jax.experimental import pallas as pl
from jax.experimental.pallas import tpu as pltpu


# ---------------------------------------------------------------------------
# Fused kernel: one-hot encode + (Linear -> ReLU -> Linear)
# ---------------------------------------------------------------------------
def onehot_forward_kernel(s_ref, a_ref, w1_ref, bias_ref, w2_ref, o_ref):
    E = s_ref.shape[1]            # embedding size (static)
    Hp = w2_ref.shape[0]          # padded hidden size (static)
    B = s_ref.shape[0]
    A = w1_ref.shape[0] - E       # num_actions (static)

    # In-kernel casts (VPU, ride free slots) — no wrapper-side convert ops.
    states = s_ref[...].astype(jnp.bfloat16)                    # (B, E)
    acts = a_ref[...].astype(jnp.int32)                         # (B, 1)

    # F.one_hot(actions).squeeze(1), built in-kernel: iota column == action id.
    onehot = (jax.lax.broadcasted_iota(jnp.int32, (B, A), 1)
              == acts).astype(jnp.bfloat16)                     # (B, A)

    # Static zero-cost views of the packed buffers.
    w1s = w1_ref[:E, :]           # (E, Hp) rows multiplying `states`
    w1a = w1_ref[E:, :]           # (A, Hp) rows multiplying one_hot(actions)
    b1 = bias_ref[:, :Hp]         # (1, Hp) f32
    b2 = bias_ref[:, Hp:]         # (1, E)  f32

    # Layer 1: concat([states, onehot]) @ W1 + b1 == split matmuls (no concat).
    h = jnp.dot(states, w1s, preferred_element_type=jnp.float32)
    h = h + jnp.dot(onehot, w1a, preferred_element_type=jnp.float32)
    h = jnp.maximum(h + b1, 0.0)                                # f32 bias + ReLU

    # Layer 2: h @ W2 + b2.
    out = jnp.dot(h.astype(jnp.bfloat16), w2_ref[...],
                  preferred_element_type=jnp.float32)
    o_ref[...] = (out + b2).astype(o_ref.dtype)


@jax.jit
def onehot_forward(states, actions, params):
    """states: (B, E) f32, actions: (B, 1) int -> (B, E) f32."""
    B, E = states.shape
    vmem = lambda: pl.BlockSpec(memory_space=pltpu.MemorySpace.VMEM)
    return pl.pallas_call(
        onehot_forward_kernel,
        out_shape=jax.ShapeDtypeStruct((B, E), jnp.float32),
        in_specs=[vmem() for _ in range(5)],
        out_specs=vmem(),
    )(states, actions, params["w1"], params["bias"], params["w2"])


# ---------------------------------------------------------------------------
# Parameter init: splits / transposes / casts / padding / bias packing are all
# hoisted here (one-time), never re-emitted per forward call.
# ---------------------------------------------------------------------------
def init_params(key, embedding_size, num_actions):
    E, A, H = embedding_size, num_actions, 2 * embedding_size
    Hp = max(128, ((H + 127) // 128) * 128)   # lane-dense hidden width
    k1, k2, k3, k4 = jax.random.split(key, 4)
    # Stored as (in, out) so the kernel does x @ W (PyTorch stores (out, in)).
    w1 = jax.random.normal(k1, (E + A, H), jnp.float32) * 0.05
    b1 = jax.random.normal(k2, (H,), jnp.float32) * 0.05
    w2 = jax.random.normal(k3, (H, E), jnp.float32) * 0.05
    b2 = jax.random.normal(k4, (E,), jnp.float32) * 0.05

    # Zero-pad the hidden dim to Hp: exact (ReLU(0)=0, padded W2 rows are 0).
    w1_p = jnp.pad(w1, ((0, 0), (0, Hp - H)))
    b1_p = jnp.pad(b1, (0, Hp - H))
    w2_p = jnp.pad(w2, ((0, Hp - H), (0, 0)))

    kernel_params = {
        "w1": w1_p.astype(jnp.bfloat16),                          # (E+A, Hp) bf16
        "bias": jnp.concatenate([b1_p, b2]).reshape(1, Hp + E),   # (1, Hp+E) f32
        "w2": w2_p.astype(jnp.bfloat16),                          # (Hp, E)  bf16
    }
    ref_params = {"w1": w1, "b1": b1, "w2": w2, "b2": b2}
    return kernel_params, ref_params


def reference_forward(states, actions, ref_params, num_actions):
    onehot = jax.nn.one_hot(actions[:, 0], num_actions, dtype=states.dtype)
    x = jnp.concatenate([states, onehot], axis=1)
    h = jax.nn.relu(x @ ref_params["w1"] + ref_params["b1"])
    return h @ ref_params["w2"] + ref_params["b2"]


if __name__ == "__main__":
    batch, embedding_size, num_actions = 2, 32, 4
    key = jax.random.PRNGKey(0)
    key, ks, ka = jax.random.split(key, 3)
    states = jax.random.normal(ks, (batch, embedding_size), jnp.float32)
    actions = jax.random.randint(ka, (batch, 1), 0, num_actions, jnp.int32)

    kparams, ref_params = init_params(key, embedding_size, num_actions)

    out = jax.block_until_ready(onehot_forward(states, actions, kparams))
    assert out.shape == (batch, embedding_size), out.shape
    assert bool(jnp.all(jnp.isfinite(out)))

    ref = reference_forward(states, actions, ref_params, num_actions)
    assert bool(jnp.allclose(out, ref, atol=2e-2, rtol=2e-2)), (
        float(jnp.max(jnp.abs(out - ref))))
    print("KERNEL_OK")
</pallas_src>

<mosaic_0001>
module attributes {stable_mosaic.version = 11 : i64} {
  func.func @onehot_forward_kernel(%arg0: memref<2x32xf32, #tpu.memory_space<vmem>>, %arg1: memref<2x1xi32, #tpu.memory_space<vmem>>, %arg2: memref<36x128xbf16, #tpu.memory_space<vmem>>, %arg3: memref<1x160xf32, #tpu.memory_space<vmem>>, %arg4: memref<128x32xbf16, #tpu.memory_space<vmem>>, %arg5: memref<2x32xf32, #tpu.memory_space<vmem>>) attributes {dimension_semantics = [], scalar_prefetch = 0 : i64, scratch_operands = 0 : i64, tpu.core_type = #tpu.core_type<tc>} {
    %c0 = arith.constant 0 : index
    %c0_0 = arith.constant 0 : index
    %0 = vector.load %arg0[%c0, %c0_0] : memref<2x32xf32, #tpu.memory_space<vmem>>, vector<2x32xf32>
    %1 = arith.truncf %0 : vector<2x32xf32> to vector<2x32xbf16>
    %c0_1 = arith.constant 0 : index
    %c0_2 = arith.constant 0 : index
    %2 = vector.load %arg1[%c0_1, %c0_2] : memref<2x1xi32, #tpu.memory_space<vmem>>, vector<2x1xi32>
    %3 = tpu.iota {dimensions = array<i32: 1>} : vector<2x4xi32>
    %4 = vector.broadcast %2 : vector<2x1xi32> to vector<2x4xi32>
    %5 = arith.cmpi eq, %3, %4 : vector<2x4xi32>
    %6 = arith.extui %5 : vector<2x4xi1> to vector<2x4xi32>
    %7 = arith.sitofp %6 : vector<2x4xi32> to vector<2x4xf32>
    %8 = arith.truncf %7 : vector<2x4xf32> to vector<2x4xbf16>
    %c0_3 = arith.constant 0 : index
    %c0_4 = arith.constant 0 : index
    %9 = vector.load %arg2[%c0_3, %c0_4] : memref<36x128xbf16, #tpu.memory_space<vmem>>, vector<32x128xbf16>
    %c32 = arith.constant 32 : index
    %c0_5 = arith.constant 0 : index
    %10 = vector.load %arg2[%c32, %c0_5] : memref<36x128xbf16, #tpu.memory_space<vmem>>, vector<4x128xbf16>
    %c0_6 = arith.constant 0 : index
    %c0_7 = arith.constant 0 : index
    %11 = vector.load %arg3[%c0_6, %c0_7] : memref<1x160xf32, #tpu.memory_space<vmem>>, vector<1x128xf32>
    %c0_8 = arith.constant 0 : index
    %c128 = arith.constant 128 : index
    %12 = vector.load %arg3[%c0_8, %c128] : memref<1x160xf32, #tpu.memory_space<vmem>>, vector<1x32xf32>
    %cst = arith.constant dense<0.000000e+00> : vector<2x128xf32>
    %13 = tpu.matmul %1, %9, %cst {dimension_numbers = #tpu.dot_dimension_numbers<[1], [0], [0], [1], [0, 0, 1, 1], [], []>} : vector<2x32xbf16>, vector<32x128xbf16>, vector<2x128xf32> -> vector<2x128xf32>
    %cst_9 = arith.constant dense<0.000000e+00> : vector<2x128xf32>
    %14 = tpu.matmul %8, %10, %cst_9 {dimension_numbers = #tpu.dot_dimension_numbers<[1], [0], [0], [1], [0, 0, 1, 1], [], []>} : vector<2x4xbf16>, vector<4x128xbf16>, vector<2x128xf32> -> vector<2x128xf32>
    %15 = arith.addf %13, %14 : vector<2x128xf32>
    %16 = vector.broadcast %11 : vector<1x128xf32> to vector<2x128xf32>
    %17 = arith.addf %15, %16 : vector<2x128xf32>
    %cst_10 = arith.constant 0.000000e+00 : f32
    %18 = vector.broadcast %cst_10 : f32 to vector<2x128xf32>
    %19 = arith.maximumf %17, %18 : vector<2x128xf32>
    %20 = arith.truncf %19 : vector<2x128xf32> to vector<2x128xbf16>
    %c0_11 = arith.constant 0 : index
    %c0_12 = arith.constant 0 : index
    %21 = vector.load %arg4[%c0_11, %c0_12] : memref<128x32xbf16, #tpu.memory_space<vmem>>, vector<128x32xbf16>
    %cst_13 = arith.constant dense<0.000000e+00> : vector<2x32xf32>
    %22 = tpu.matmul %20, %21, %cst_13 {dimension_numbers = #tpu.dot_dimension_numbers<[1], [0], [0], [1], [0, 0, 1, 1], [], []>} : vector<2x128xbf16>, vector<128x32xbf16>, vector<2x32xf32> -> vector<2x32xf32>
    %23 = vector.broadcast %12 : vector<1x32xf32> to vector<2x32xf32>
    %24 = arith.addf %22, %23 : vector<2x32xf32>
    %c0_14 = arith.constant 0 : index
    %c0_15 = arith.constant 0 : index
    %25 = vector.load %arg5[%c0_14, %c0_15] : memref<2x32xf32, #tpu.memory_space<vmem>>, vector<2x32xf32>
    tpu.vector_store %arg5[%c0_14, %c0_15], %24 {strides = array<i32>} : memref<2x32xf32, #tpu.memory_space<vmem>>, vector<2x32xf32>,
    return
  }
}

</mosaic_0001>

<llo_original>
// kernel: onehot_forward.1
$region0: #{onehot_forward.1}
  #allocation0 [shape = 'u32[]', space=smem, size = 0x4, offset = 0x4, fixed_abs, tag = 'smem constant byte address 0x4 - core index']
  #allocation1 [shape = 'u32[72,128]{1,0:T(1,128)}', space=vmem, size = 0x9000, scoped, tag = 'internal scratch']
  %s0 = inlined_call_operand.vmem [shape: f32[2,32], index: 0, kind: input, shape index: {}]
  %s1 = inlined_call_operand.vmem [shape: s32[2,1], index: 1, kind: input, shape index: {}]
  %s2 = inlined_call_operand.vmem [shape: bf16[36,128], index: 2, kind: input, shape index: {}]
  %s3 = inlined_call_operand.vmem [shape: f32[1,160], index: 3, kind: input, shape index: {}]
  %s4 = inlined_call_operand.vmem [shape: bf16[128,32], index: 4, kind: input, shape index: {}]
  %s5 = inlined_call_operand.hbm [shape: f32[2,32], index: 5, kind: output, shape index: {}]
  %s6 = sld [smem:[#allocation0]]
  $region30: #{onehot_forward.1} parent=0
    _
  %s8 = ssub.s32 1, %s6
  %s9 = scalar_select 0, %s8, %s6
  $region1: #{onehot_forward.1} parent=0
    #allocation2 [shape = 'u8[1024]{0}', space=vmem, size = 0x400, scoped, tag = 'output window, operand 0, single buffered']
    #allocation3 [shape = 's32[1]{0}', space=sflag, size = 0x4, scoped, tag = 'scoped memory for onehot_forward.1']
    %10 = vsyncpa [#allocation3], 0
    // Predicated region
    $region2: #{onehot_forward.1} parent=1 // pred_check
      _
    $region3: #{onehot_forward.1} parent=1 // pred_check_branch
      %12 = sbr.rel (0) target = $region5
    $region4: #{onehot_forward.1} parent=1 // pred_region
      _
    $region5: #{onehot_forward.1} parent=1 // pred_fallthru
      _
    // Predicated region
    $region6: #{onehot_forward.1} parent=1 // pred_check
      _
    $region7: #{onehot_forward.1} parent=1 // pred_check_branch
      %14 = sbr.rel (0) target = $region9
    $region8: #{onehot_forward.1} parent=1 // pred_region
      _
    $region9: #{onehot_forward.1} parent=1 // pred_fallthru
      _
    // Predicated region
    $region10: #{onehot_forward.1} parent=1 // pred_check
      _
    $region11: #{onehot_forward.1} parent=1 // pred_check_branch
      %16 = sbr.rel (0) target = $region13
    $region12: #{onehot_forward.1} parent=1 // pred_region
      _
    $region13: #{onehot_forward.1} parent=1 // pred_fallthru
      _
    // Predicated region
    $region14: #{onehot_forward.1} parent=1 // pred_check
      _
    $region15: #{onehot_forward.1} parent=1 // pred_check_branch
      %18 = sbr.rel (0) target = $region17
    $region16: #{onehot_forward.1} parent=1 // pred_region
      _
    $region17: #{onehot_forward.1} parent=1 // pred_fallthru
      _
    // Predicated region
    $region18: #{onehot_forward.1} parent=1 // pred_check
      _
    $region19: #{onehot_forward.1} parent=1 // pred_check_branch
      %20 = sbr.rel (0) target = $region21
    $region20: #{onehot_forward.1} parent=1 // pred_region
      _
    $region21: #{onehot_forward.1} parent=1 // pred_fallthru
      _
    %v22 = vld [vmem:[%s0] sm:$0x3]
    %v23 = vpack.c.bf16 %v22, %v22
    %v24 = vld [vmem:[%s1] sm:$0x3]
    %v25 = vlaneseq
    %v26 = vand.u32 %v25, 127
    %27 = vset.pattern.permute.xlu0 0
    %28 = vperm.xlu0 %27, %v24
    %v29 = vpop.permute.xlu0 %28
    %vm30 = vcmp.eq.s32.totalorder %v26, %v29
    %v31 = vsel %vm30, 1, 0
    %v32 = vcvt.s32.f32 %v31
    %v33 = vpack.c.bf16 %v32, %v32
    %v34 = vld [vmem:[%s2] sm:$0xf]
    %v35 = vld [vmem:[%s2 + $0x4] sm:$0xf]
    %v36 = vld [vmem:[%s2 + $0x8] sm:$0xf]
    %v37 = vld [vmem:[%s2 + $0xc] sm:$0xf]
    %v38 = vld [vmem:[%s2 + $0x10] sm:$0x3]
    %v39 = vld [vmem:[%s3] sm:$0x1]
    %v40 = vld [vmem:[%s3 + $0x1] sm:$0x1]
    %vm41 = vcmask 31744
    %v43 = vsel %vm41, %v33, 0
    %vm45 = vcmask 1041408
    %v47 = vsel %vm45, %v38, 0
    %49 = vmatpush.bf16.msra.mxu0 0
    %50 = vmatpush.bf16.msra.mxu0 0
    %51 = vmatpush.bf16.msra.mxu0 0
    %52 = vmatpush.bf16.msra.mxu0 0
    %53 = vmatpush.bf16.msra.mxu0 0
    %54 = vmatpush.bf16.msra.mxu0 0
    %55 = vmatpush.bf16.msra.mxu0 0
    %56 = vmatpush.bf16.msra.mxu0 %v47
    %57 = vmatmul.bf16.gmra.mxu0 %v43
    %v58 = vpop.f32.mrf.mxu0
    %v59 = vadd.f32 0.0, %v58
    %v60 = vpop.f32.mrf.mxu0
    %61 = vdwg.mxu0
    %v66 = vunpack.c.l.b16 %v34
    %v67 = vunpack.c.l.b16 %v35
    %v68 = vunpack.c.l.b16 %v36
    %v69 = vunpack.c.l.b16 %v37
    %v70 = vpack.c.b16 %v67, %v66
    %v71 = vpack.c.b16 %v69, %v68
    %vm74 = vcmask 261120
    %v76 = vsel %vm74, %v23, 0
    %78 = vmatpush.bf16.msra.mxu0 0
    %79 = vmatpush.bf16.msra.mxu0 0
    %80 = vmatpush.bf16.msra.mxu0 0
    %81 = vmatpush.bf16.msra.mxu0 0
    %82 = vmatpush.bf16.msra.mxu0 0
    %83 = vmatpush.bf16.msra.mxu0 0
    %84 = vmatpush.bf16.msra.mxu0 %v71
    %85 = vmatpush.bf16.msra.mxu0 %v70
    %86 = vmatmul.bf16.gmra.mxu0 %v76
    %v87 = vpop.f32.mrf.mxu0
    %v88 = vadd.f32 %v59, %v87
    %v89 = vpop.f32.mrf.mxu0
    %90 = vdwg.mxu0
    %v92 = vperm.slane %v39, 0
    %v94 = vadd.f32 %v88, %v92
    %v95 = vmax.f32 %v94, 0.0
    %v96 = vpack.c.bf16 %v95, %v95
    %v97 = vld [vmem:[%s4] sm:$0xf]
    %v98 = vld [vmem:[%s4 + $0x4] sm:$0xf]
    %v99 = vld [vmem:[%s4 + $0x8] sm:$0xf]
    %v100 = vld [vmem:[%s4 + $0xc] sm:$0xf]
    %v101 = vld [vmem:[%s4 + $0x10] sm:$0xf]
    %v102 = vld [vmem:[%s4 + $0x14] sm:$0xf]
    %v103 = vld [vmem:[%s4 + $0x18] sm:$0xf]
    %v104 = vld [vmem:[%s4 + $0x1c] sm:$0xf]
    %v105 = vld [vmem:[%s4 + $0x20] sm:$0xf]
    %v106 = vld [vmem:[%s4 + $0x24] sm:$0xf]
    %v107 = vld [vmem:[%s4 + $0x28] sm:$0xf]
    %v108 = vld [vmem:[%s4 + $0x2c] sm:$0xf]
    %v109 = vld [vmem:[%s4 + $0x30] sm:$0xf]
    %v110 = vld [vmem:[%s4 + $0x34] sm:$0xf]
    %v111 = vld [vmem:[%s4 + $0x38] sm:$0xf]
    %v112 = vld [vmem:[%s4 + $0x3c] sm:$0xf]
    %v114 = vperm.slane %v40, 0
    %v132 = vunpack.c.l.b16 %v97
    %v133 = vunpack.c.l.b16 %v98
    %v134 = vunpack.c.l.b16 %v99
    %v135 = vunpack.c.l.b16 %v100
    %v136 = vunpack.c.l.b16 %v101
    %v137 = vunpack.c.l.b16 %v102
    %v138 = vunpack.c.l.b16 %v103
    %v139 = vunpack.c.l.b16 %v104
    %v140 = vunpack.c.l.b16 %v105
    %v141 = vunpack.c.l.b16 %v106
    %v142 = vunpack.c.l.b16 %v107
    %v143 = vunpack.c.l.b16 %v108
    %v144 = vunpack.c.l.b16 %v109
    %v145 = vunpack.c.l.b16 %v110
    %v146 = vunpack.c.l.b16 %v111
    %v147 = vunpack.c.l.b16 %v112
    %v148 = vpack.c.b16 %v133, %v132
    %v149 = vpack.c.b16 %v135, %v134
    %v150 = vpack.c.b16 %v137, %v136
    %v151 = vpack.c.b16 %v139, %v138
    %v152 = vpack.c.b16 %v141, %v140
    %v153 = vpack.c.b16 %v143, %v142
    %v154 = vpack.c.b16 %v145, %v144
    %v155 = vpack.c.b16 %v147, %v146
    %164 = vmatpush.bf16.msra.mxu0 %v155
    %165 = vmatpush.bf16.msra.mxu0 %v154
    %166 = vmatpush.bf16.msra.mxu0 %v153
    %167 = vmatpush.bf16.msra.mxu0 %v152
    %168 = vmatpush.bf16.msra.mxu0 %v151
    %169 = vmatpush.bf16.msra.mxu0 %v150
    %170 = vmatpush.bf16.msra.mxu0 %v149
    %171 = vmatpush.bf16.msra.mxu0 %v148
    %172 = vmatmul.bf16.gmra.mxu0 %v96
    %v173 = vpop.f32.mrf.mxu0
    %v174 = vadd.f32 %v114, %v173
    %v175 = vpop.f32.mrf.mxu0
    %176 = vdwg.mxu0
    %vm177 = vcmask 254976
    %178 = vst.msk [vmem:[#allocation2] sm:$0x3] %vm177, %v174
    // Predicated region
    $region22: #{onehot_forward.1} parent=1 // pred_check
      _
    $region23: #{onehot_forward.1} parent=1 // pred_check_branch
      %180 = sbr.rel (0) target = $region25
    $region24: #{onehot_forward.1} parent=1 // pred_region
      %182 = vsyncadd [#allocation3], 0
      %s184 = sshll.u32 [#allocation2], 4
      %s185 = int_to_ptr.vmem [resolvable:$true] %s184
      %s186 = sshll.u32 %s5, 4
      %s187 = int_to_ptr.hbm [resolvable:$true] %s186
      %189 = dma.vmem_to_hbm [thread:$0]  %s185, 32, %s187, [#allocation3]
    $region25: #{onehot_forward.1} parent=1 // pred_fallthru
      _
    // Predicated region
    $region26: #{onehot_forward.1} parent=1 // pred_check
      _
    $region27: #{onehot_forward.1} parent=1 // pred_check_branch
      %191 = sbr.rel (0) target = $region29
    $region28: #{onehot_forward.1} parent=1 // pred_region
      %193 = dma.done [#allocation3], 32
    $region29: #{onehot_forward.1} parent=1 // pred_fallthru
      _
    %194 = vsyncpa [#allocation3], 1

</llo_original>
